<compile_context>
chip_gen: v6e
topology: v6e:2x2x1
jax: 0.10.0
libtpu: 0.0.40
codegen_flags: <defaults>
</compile_context>

<pallas_src>
import jax
import jax.numpy as jnp
from jax.experimental import pallas as pl
from jax.experimental.pallas import tpu as pltpu


def _bilinear_scorer_kernel(a_ref, b_ref, wt_ref, bias_ref, o_ref):
    # MXU matmul in bf16, f32 accumulation:  Wb = b @ W^T
    b_bf16 = b_ref[...].astype(jnp.bfloat16)
    wb = jnp.dot(b_bf16, wt_ref[...], preferred_element_type=jnp.float32)
    wb = wb + bias_ref[...].astype(jnp.float32)        # (1, D) broadcast, once/tile
    a = a_ref[...].astype(jnp.float32)
    score = jnp.sum(a * wb, axis=-1)                   # (TM,) f32, lane reduce
    # Lane-dense store: one (1, TM) row per tile -> unmasked full-width vst.
    o_ref[...] = score[None, :].astype(o_ref.dtype)


def _round_up(x, m):
    return ((x + m - 1) // m) * m


def bilinear_scorer(a_embeds, b_embeds, W, bias, *, block_rows=512):
    """score = sum(a_embeds * (b_embeds @ W.T + bias), axis=-1).

    a_embeds, b_embeds: (..., D); W: (D, D); bias: (D,) -> returns (...,).
    """
    lead_shape = a_embeds.shape[:-1]
    D = a_embeds.shape[-1]
    a2 = a_embeds.reshape(-1, D)
    b2 = b_embeds.reshape(-1, D)
    M = a2.shape[0]

    # --- pick TM so (double-buffered a+b tiles) + resident bf16 W^T fit VMEM
    #     with headroom under the 64 MiB scoped limit (v7x has 64 MiB total).
    vmem_budget = 48 * 1024 * 1024
    wt_bytes = D * D * 2                      # resident bf16 W^T
    per_row_bytes = 2 * 2 * D * 4             # a + b, double-buffered, f32
    tm_cap = max((vmem_budget - wt_bytes) // per_row_bytes, 8)
    tm = int(min(block_rows, tm_cap, _round_up(M, 8)))
    tm = max(8, (tm // 8) * 8)                # sublane constraint on a/b tiles
    if tm >= 128:
        tm = (tm // 128) * 128                # lane constraint on tiled output row
    # TODO(synk): for very large D (W^T not VMEM-resident) add a D_out grid
    # axis with a (1, TM) f32 accumulator in scratch (init/store via pl.when).

    m_pad = _round_up(M, tm)
    if m_pad != M:
        a2 = jnp.pad(a2, ((0, m_pad - M), (0, 0)))
        b2 = jnp.pad(b2, ((0, m_pad - M), (0, 0)))
    num_tiles = m_pad // tm

    wt = W.T.astype(jnp.bfloat16)             # (D_in, D_out) for b @ W^T, bf16
    bias2 = bias.reshape(1, D).astype(jnp.float32)
    out_dtype = a_embeds.dtype

    out = pl.pallas_call(
        _bilinear_scorer_kernel,
        grid=(num_tiles,),
        in_specs=[
            pl.BlockSpec((tm, D), lambda i: (i, 0)),   # a tile (pipelined)
            pl.BlockSpec((tm, D), lambda i: (i, 0)),   # b tile (pipelined)
            pl.BlockSpec((D, D), lambda i: (0, 0)),    # W^T   (resident)
            pl.BlockSpec((1, D), lambda i: (0, 0)),    # bias  (resident)
        ],
        out_specs=pl.BlockSpec((1, tm), lambda i: (0, i)),   # lane-dense scores
        out_shape=jax.ShapeDtypeStruct((1, m_pad), out_dtype),
        compiler_params=pltpu.CompilerParams(
            dimension_semantics=("parallel",),   # shard tiles across TCs on v7x
            vmem_limit_bytes=64 * 1024 * 1024,
        ),
    )(a2, b2, wt, bias2)

    return out[0, :M].reshape(lead_shape)


if __name__ == "__main__":
    # Small, deterministic example: batch=2, seq=8, hidden=32
    B, N, D = 2, 8, 32
    key = jax.random.PRNGKey(0)
    k_a, k_b, k_w, k_bias = jax.random.split(key, 4)

    a_embeds = jax.random.normal(k_a, (B, N, D), dtype=jnp.float32)
    b_embeds = jax.random.normal(k_b, (B, N, D), dtype=jnp.float32)

    # nn.Linear(D, D) default init: U(-1/sqrt(D), 1/sqrt(D)) for W and bias
    bound = 1.0 / jnp.sqrt(jnp.float32(D))
    W = jax.random.uniform(k_w, (D, D), minval=-bound, maxval=bound,
                           dtype=jnp.float32)
    bias = jax.random.uniform(k_bias, (D,), minval=-bound, maxval=bound,
                              dtype=jnp.float32)

    scores = bilinear_scorer(a_embeds, b_embeds, W, bias)
    scores = jax.block_until_ready(scores)

    # Reference (f32). Kernel does the matmul in bf16 with f32 accumulation,
    # so use a relaxed tolerance.
    ref = jnp.sum(a_embeds * (b_embeds @ W.T + bias), axis=-1)
    assert scores.shape == (B, N)
    assert jnp.allclose(scores, ref, atol=5e-2, rtol=5e-2)

    # Exercise the multi-tile / row-padded path as well (M=600 -> 2 tiles).
    k_a2, k_b2 = jax.random.split(jax.random.PRNGKey(1), 2)
    a_big = jax.random.normal(k_a2, (2, 300, D), dtype=jnp.float32)
    b_big = jax.random.normal(k_b2, (2, 300, D), dtype=jnp.float32)
    scores_big = jax.block_until_ready(bilinear_scorer(a_big, b_big, W, bias))
    ref_big = jnp.sum(a_big * (b_big @ W.T + bias), axis=-1)
    assert scores_big.shape == (2, 300)
    assert jnp.allclose(scores_big, ref_big, atol=5e-2, rtol=5e-2)

    print("KERNEL_OK")
</pallas_src>

<mosaic_0001>
module attributes {stable_mosaic.version = 11 : i64} {
  func.func @_bilinear_scorer_kernel(%arg0: i32, %arg1: memref<16x32xf32, #tpu.memory_space<vmem>>, %arg2: memref<16x32xf32, #tpu.memory_space<vmem>>, %arg3: memref<32x32xbf16, #tpu.memory_space<vmem>>, %arg4: memref<1x32xf32, #tpu.memory_space<vmem>>, %arg5: memref<1x16xf32, #tpu.memory_space<vmem>>) attributes {dimension_semantics = [#tpu.dimension_semantics<parallel>], iteration_bounds = array<i64: 1>, scalar_prefetch = 0 : i64, scratch_operands = 0 : i64, tpu.core_type = #tpu.core_type<tc>, window_params = [{transform_indices = @transform_0, window_bounds = array<i64: 16, 32>}, {transform_indices = @transform_1, window_bounds = array<i64: 16, 32>}, {pipeline_mode = #tpu.pipeline_mode<synchronous>, transform_indices = @transform_2, window_bounds = array<i64: 32, 32>}, {pipeline_mode = #tpu.pipeline_mode<synchronous>, transform_indices = @transform_3, window_bounds = array<i64: 1, 32>}, {transform_indices = @transform_4, window_bounds = array<i64: 1, 16>}]} {
    %c0 = arith.constant 0 : index
    %c0_0 = arith.constant 0 : index
    %0 = vector.load %arg2[%c0, %c0_0] : memref<16x32xf32, #tpu.memory_space<vmem>>, vector<16x32xf32>
    %1 = arith.truncf %0 : vector<16x32xf32> to vector<16x32xbf16>
    %c0_1 = arith.constant 0 : index
    %c0_2 = arith.constant 0 : index
    %2 = vector.load %arg3[%c0_1, %c0_2] : memref<32x32xbf16, #tpu.memory_space<vmem>>, vector<32x32xbf16>
    %cst = arith.constant dense<0.000000e+00> : vector<16x32xf32>
    %3 = tpu.matmul %1, %2, %cst {dimension_numbers = #tpu.dot_dimension_numbers<[1], [0], [0], [1], [0, 0, 1, 1], [], []>} : vector<16x32xbf16>, vector<32x32xbf16>, vector<16x32xf32> -> vector<16x32xf32>
    %c0_3 = arith.constant 0 : index
    %c0_4 = arith.constant 0 : index
    %4 = vector.load %arg4[%c0_3, %c0_4] : memref<1x32xf32, #tpu.memory_space<vmem>>, vector<1x32xf32>
    %5 = vector.broadcast %4 : vector<1x32xf32> to vector<16x32xf32>
    %6 = arith.addf %3, %5 : vector<16x32xf32>
    %c0_5 = arith.constant 0 : index
    %c0_6 = arith.constant 0 : index
    %7 = vector.load %arg1[%c0_5, %c0_6] : memref<16x32xf32, #tpu.memory_space<vmem>>, vector<16x32xf32>
    %8 = arith.mulf %7, %6 : vector<16x32xf32>
    %cst_7 = arith.constant dense<0.000000e+00> : vector<16xf32>
    %9 = vector.multi_reduction <add>, %8, %cst_7 [1] : vector<16x32xf32> to vector<16xf32>
    %10 = vector.shape_cast %9 : vector<16xf32> to vector<1x16xf32>
    %c0_8 = arith.constant 0 : index
    %c0_9 = arith.constant 0 : index
    %11 = vector.load %arg5[%c0_8, %c0_9] : memref<1x16xf32, #tpu.memory_space<vmem>>, vector<1x16xf32>
    tpu.vector_store %arg5[%c0_8, %c0_9], %10 {strides = array<i32>} : memref<1x16xf32, #tpu.memory_space<vmem>>, vector<1x16xf32>,
    return
  }
  func.func @transform_0(%arg0: i32) -> (i32, i32) {
    %c0_i32 = arith.constant 0 : i32
    %c0_i32_0 = arith.constant 0 : i32
    return %arg0, %c0_i32 : i32, i32
  }
  func.func @transform_1(%arg0: i32) -> (i32, i32) {
    %c0_i32 = arith.constant 0 : i32
    %c0_i32_0 = arith.constant 0 : i32
    return %arg0, %c0_i32 : i32, i32
  }
  func.func @transform_2(%arg0: i32) -> (i32, i32) {
    %c0_i32 = arith.constant 0 : i32
    %c0_i32_0 = arith.constant 0 : i32
    %c0_i32_1 = arith.constant 0 : i32
    return %c0_i32, %c0_i32_0 : i32, i32
  }
  func.func @transform_3(%arg0: i32) -> (i32, i32) {
    %c0_i32 = arith.constant 0 : i32
    %c0_i32_0 = arith.constant 0 : i32
    %c0_i32_1 = arith.constant 0 : i32
    return %c0_i32, %c0_i32_0 : i32, i32
  }
  func.func @transform_4(%arg0: i32) -> (i32, i32) {
    %c0_i32 = arith.constant 0 : i32
    %c0_i32_0 = arith.constant 0 : i32
    return %c0_i32, %arg0 : i32, i32
  }
}

</mosaic_0001>

<llo_original>
// kernel: tpu_custom_call.1
$region0: #{tpu_custom_call.1}
  #allocation0 [shape = 'u32[]', space=smem, size = 0x4, offset = 0x4, fixed_abs, tag = 'smem constant byte address 0x4 - core index']
  #allocation1 [shape = 'u32[144,128]{1,0:T(1,128)}', space=vmem, size = 0x12000, scoped, tag = 'internal scratch']
  %s0 = inlined_call_operand.hbm [shape: f32[16,32], index: 0, kind: input, shape index: {}]
  %s1 = inlined_call_operand.hbm [shape: f32[16,32], index: 1, kind: input, shape index: {}]
  %s2 = inlined_call_operand.hbm [shape: bf16[32,32], index: 2, kind: input, shape index: {}]
  %s3 = inlined_call_operand.vmem [shape: f32[1,32], index: 3, kind: input, shape index: {}]
  %s4 = inlined_call_operand.hbm [shape: f32[1,16], index: 4, kind: output, shape index: {}]
  %s5 = sld [smem:[#allocation0]]
  $region38: #{tpu_custom_call.1} parent=0
    _
  %s7 = ssub.s32 1, %s5
  %s8 = scalar_select 0, %s7, %s5
  $region1: #{tpu_custom_call.1} parent=0
    #allocation2 [shape = 'u8[8192]{0}', space=vmem, size = 0x2000, scoped, tag = 'input window, operand 0, single buffered']
    #allocation3 [shape = 's32[1]{0}', space=sflag, size = 0x4, scoped, tag = 'scoped memory for tpu_custom_call.1']
    #allocation4 [shape = 's32[1]{0}', space=sflag, size = 0x4, scoped, tag = 'scoped memory for tpu_custom_call.1']
    #allocation5 [shape = 'u8[8192]{0}', space=vmem, size = 0x2000, scoped, tag = 'input window, operand 1, single buffered']
    #allocation6 [shape = 's32[1]{0}', space=sflag, size = 0x4, scoped, tag = 'scoped memory for tpu_custom_call.1']
    #allocation7 [shape = 'u8[8192]{0}', space=vmem, size = 0x2000, scoped, tag = 'input window, operand 2, single buffered']
    #allocation8 [shape = 'u8[512]{0}', space=vmem, size = 0x400, scoped, tag = 'output window, operand 0, single buffered']
    %9 = vsyncpa [#allocation3], 0
    %10 = vsyncpa [#allocation6], 0
    %11 = vsyncpa [#allocation4], 0
    // Predicated region
    $region2: #{tpu_custom_call.1} parent=1 // pred_check
      _
    $region3: #{tpu_custom_call.1} parent=1 // pred_check_branch
      %13 = sbr.rel (0) target = $region5
    $region4: #{tpu_custom_call.1} parent=1 // pred_region
      %s15 = ssub.s32 256, 256
      %16 = vsyncadd [#allocation3], %s15
      %s17 = sshll.u32 [#allocation2], 4
      %s18 = int_to_ptr.vmem [resolvable:$true] %s17
      %23 = dma.hbm_to_vmem [thread:$0]  %s0, 256, %s18, [#allocation3], 128, 128, 8
    $region5: #{tpu_custom_call.1} parent=1 // pred_fallthru
      _
    // Predicated region
    $region6: #{tpu_custom_call.1} parent=1 // pred_check
      _
    $region7: #{tpu_custom_call.1} parent=1 // pred_check_branch
      %25 = sbr.rel (0) target = $region9
    $region8: #{tpu_custom_call.1} parent=1 // pred_region
      %s27 = ssub.s32 256, 256
      %28 = vsyncadd [#allocation6], %s27
      %s29 = sshll.u32 [#allocation5], 4
      %s30 = int_to_ptr.vmem [resolvable:$true] %s29
      %35 = dma.hbm_to_vmem [thread:$0]  %s1, 256, %s30, [#allocation6], 128, 128, 8
    $region9: #{tpu_custom_call.1} parent=1 // pred_fallthru
      _
    // Predicated region
    $region10: #{tpu_custom_call.1} parent=1 // pred_check
      _
    $region11: #{tpu_custom_call.1} parent=1 // pred_check_branch
      %37 = sbr.rel (0) target = $region13
    $region12: #{tpu_custom_call.1} parent=1 // pred_region
      %s39 = ssub.s32 256, 256
      %40 = vsyncadd [#allocation6], %s39
      %s41 = sshll.u32 [#allocation7], 4
      %s42 = int_to_ptr.vmem [resolvable:$true] %s41
      %47 = dma.hbm_to_vmem [thread:$0]  %s2, 256, %s42, [#allocation6], 64, 64, 4
    $region13: #{tpu_custom_call.1} parent=1 // pred_fallthru
      _
    // Predicated region
    $region14: #{tpu_custom_call.1} parent=1 // pred_check
      _
    $region15: #{tpu_custom_call.1} parent=1 // pred_check_branch
      %49 = sbr.rel (0) target = $region17
    $region16: #{tpu_custom_call.1} parent=1 // pred_region
      _
    $region17: #{tpu_custom_call.1} parent=1 // pred_fallthru
      _
    // Predicated region
    $region18: #{tpu_custom_call.1} parent=1 // pred_check
      _
    $region19: #{tpu_custom_call.1} parent=1 // pred_check_branch
      %51 = sbr.rel (0) target = $region21
    $region20: #{tpu_custom_call.1} parent=1 // pred_region
      %52 = dma.done [#allocation3], 256
    $region21: #{tpu_custom_call.1} parent=1 // pred_fallthru
      _
    // Predicated region
    $region22: #{tpu_custom_call.1} parent=1 // pred_check
      _
    $region23: #{tpu_custom_call.1} parent=1 // pred_check_branch
      %54 = sbr.rel (0) target = $region25
    $region24: #{tpu_custom_call.1} parent=1 // pred_region
      %55 = dma.done [#allocation6], 256
    $region25: #{tpu_custom_call.1} parent=1 // pred_fallthru
      _
    // Predicated region
    $region26: #{tpu_custom_call.1} parent=1 // pred_check
      _
    $region27: #{tpu_custom_call.1} parent=1 // pred_check_branch
      %57 = sbr.rel (0) target = $region29
    $region28: #{tpu_custom_call.1} parent=1 // pred_region
      %58 = dma.done [#allocation6], 256
    $region29: #{tpu_custom_call.1} parent=1 // pred_fallthru
      _
    %v60 = vld [vmem:[#allocation5] sm:$0xff]
    %v61 = vld [vmem:[#allocation5 + $0x8] sm:$0xff]
    %v62 = vpack.c.bf16 %v61, %v60
    %v63 = vld [vmem:[#allocation7] sm:$0xf]
    %v64 = vld [vmem:[#allocation7 + $0x4] sm:$0xf]
    %v65 = vld [vmem:[#allocation7 + $0x8] sm:$0xf]
    %v66 = vld [vmem:[#allocation7 + $0xc] sm:$0xf]
    %v67 = vld [vmem:[%s3] sm:$0x1]
    %v69 = vlaneseq
    %v70 = vshrl.u32 %v69, 7
    %v71 = vsub.s32 0, %v70
    %v72 = vrot.slane %v67, %v71
    %v78 = vunpack.c.l.b16 %v63
    %v79 = vunpack.c.l.b16 %v64
    %v80 = vunpack.c.l.b16 %v65
    %v81 = vunpack.c.l.b16 %v66
    %v82 = vpack.c.b16 %v79, %v78
    %v83 = vpack.c.b16 %v81, %v80
    %vm86 = vcmask 261120
    %v88 = vsel %vm86, %v62, 0
    %90 = vmatprep.subr.bf16.mxu0 0
    %91 = vmatpush1.bf16.msra.mxu0 0
    %92 = vmatprep.subr.bf16.mxu0 0
    %93 = vmatpush1.bf16.msra.mxu0 0
    %94 = vmatprep.subr.bf16.mxu0 0
    %95 = vmatpush1.bf16.msra.mxu0 0
    %96 = vmatprep.subr.bf16.mxu0 0
    %97 = vmatpush1.bf16.msra.mxu0 0
    %98 = vmatprep.subr.bf16.mxu0 0
    %99 = vmatpush1.bf16.msra.mxu0 0
    %100 = vmatprep.subr.bf16.mxu0 0
    %101 = vmatpush1.bf16.msra.mxu0 0
    %102 = vmatprep.subr.bf16.mxu0 0
    %103 = vmatpush1.bf16.msra.mxu0 %v83
    %104 = vmatprep.subr.bf16.mxu0 0
    %105 = vmatpush1.bf16.msra.mxu0 %v82
    %106 = vmatprep.subr.bf16.mxu0 0
    %107 = vmatpush2.bf16.msra.mxu0 0
    %108 = vmatprep.subr.bf16.mxu0 0
    %109 = vmatpush2.bf16.msra.mxu0 0
    %110 = vmatprep.subr.bf16.mxu0 0
    %111 = vmatpush2.bf16.msra.mxu0 0
    %112 = vmatprep.subr.bf16.mxu0 0
    %113 = vmatpush2.bf16.msra.mxu0 0
    %114 = vmatprep.subr.bf16.mxu0 0
    %115 = vmatpush2.bf16.msra.mxu0 0
    %116 = vmatprep.subr.bf16.mxu0 0
    %117 = vmatpush2.bf16.msra.mxu0 0
    %118 = vmatprep.subr.bf16.mxu0 0
    %119 = vmatpush2.bf16.msra.mxu0 0
    %120 = vmatprep.subr.bf16.mxu0 0
    %121 = vmatpush2.bf16.msra.mxu0 0
    %122 = vmatprep.mubr.bf16.mxu0 0
    %123 = vmatmul.mubr.bf16.gmra.mxu0 %v88
    %v124 = vpop.f32.mrf.mxu0
    %v125 = vadd.f32 %v72, %v124
    %v126 = vpop.f32.mrf.mxu0
    %v127 = vpop.f32.mrf.mxu0
    %v128 = vadd.f32 %v72, %v127
    %v129 = vpop.f32.mrf.mxu0
    %130 = vdwg.mxu0
    %v131 = vld [vmem:[#allocation2] sm:$0xff]
    %v132 = vld [vmem:[#allocation2 + $0x8] sm:$0xff]
    %v133 = vmul.f32 %v131, %v125
    %v134 = vmul.f32 %v132, %v128
    %v135 = vsel %vm86, %v133, 0.0
    %136 = vadd.xlane.f32.xlu0 %v135
    %v137 = vpop.xlane.xlu0 %136
    %v138 = vsel %vm86, %v134, 0.0
    %139 = vadd.xlane.f32.xlu0 %v138
    %v140 = vpop.xlane.xlu0 %139
    %v143 = vlaneseq
    %v144 = vand.u32 %v143, 127
    %v145 = vlaneseq
    %v146 = vshrl.u32 %v145, 7
    %v147 = vsub.s32 %v144, %v146
    %v148 = vrot.slane %v137, %v147
    %v149 = vadd.s32 %v144, 4294967288
    %v150 = vlaneseq
    %v151 = vshrl.u32 %v150, 7
    %v152 = vsub.s32 %v149, %v151
    %v153 = vrot.slane %v140, %v152
    %vm154 = vcmask 130112
    %v155 = vsel %vm154, %v153, %v148
    %vm157 = vcmask 122880
    %158 = vst.msk [vmem:[#allocation8] sm:$0x1] %vm157, %v155
    // Predicated region
    $region30: #{tpu_custom_call.1} parent=1 // pred_check
      _
    $region31: #{tpu_custom_call.1} parent=1 // pred_check_branch
      %160 = sbr.rel (0) target = $region33
    $region32: #{tpu_custom_call.1} parent=1 // pred_region
      %s162 = ssub.s32 16, 16
      %163 = vsyncadd [#allocation4], %s162
      %s165 = sshll.u32 [#allocation8], 4
      %s166 = int_to_ptr.vmem [resolvable:$true] %s165
      %168 = dma.vmem_to_hbm [thread:$0]  %s166, 16, %s4, [#allocation4]
    $region33: #{tpu_custom_call.1} parent=1 // pred_fallthru
      _
    // Predicated region
    $region34: #{tpu_custom_call.1} parent=1 // pred_check
      _
    $region35: #{tpu_custom_call.1} parent=1 // pred_check_branch
      %170 = sbr.rel (0) target = $region37
    $region36: #{tpu_custom_call.1} parent=1 // pred_region
      %171 = dma.done [#allocation4], 16
    $region37: #{tpu_custom_call.1} parent=1 // pred_fallthru
      _
    %172 = vsyncpa [#allocation3], 1
    %173 = vsyncpa [#allocation6], 1
    %174 = vsyncpa [#allocation4], 1

</llo_original>
